<compile_context>
chip_gen: v7x
topology: tpu7x:2x2x1
jax: 0.10.0
libtpu: 0.0.40
codegen_flags: <defaults>
</compile_context>

<pallas_src>
import functools

import jax
import jax.numpy as jnp
from jax.experimental import pallas as pl
from jax.experimental.pallas import tpu as pltpu


# -----------------------------------------------------------------------------
# Kernel bodies.  Grid = (B // TB, S // tS); axis 0 = batch ("parallel"),
# axis 1 = sequence reduction ("arbitrary", last).
# -----------------------------------------------------------------------------
def _mean_pool_kernel(x_ref, o_ref, acc_ref, *, inv_seq_len):
    k = pl.program_id(1)

    @pl.when(k == 0)
    def _():
        acc_ref[...] = jnp.zeros_like(acc_ref)

    x = x_ref[...].astype(jnp.float32)                    # (TB, tS, D)
    acc_ref[...] += jnp.sum(x, axis=1)                    # (TB, D) sublane reduce

    @pl.when(k == pl.num_programs(1) - 1)
    def _():
        # Constant multiply instead of a vector divide, applied once at finalize.
        o_ref[...] = (acc_ref[...] * inv_seq_len).astype(o_ref.dtype)


def _masked_pool_kernel(mask_ref, x_ref, o_ref, acc_ref, cnt_ref):
    k = pl.program_id(1)

    @pl.when(k == 0)
    def _():
        acc_ref[...] = jnp.zeros_like(acc_ref)
        cnt_ref[...] = jnp.zeros_like(cnt_ref)

    m = mask_ref[...].astype(jnp.float32)                 # (TB, tS)
    x = x_ref[...].astype(jnp.float32)                    # (TB, tS, D)
    # VPU multiply + XLU sublane reduction (no M=1 MXU matmul).
    acc_ref[...] += jnp.sum(x * m[:, :, None], axis=1)    # (TB, D)
    cnt_ref[...] += jnp.sum(m, axis=1, keepdims=True)     # (TB, 1)

    @pl.when(k == pl.num_programs(1) - 1)
    def _():
        # Exact divide once per output row (matches the reference epsilon).
        o_ref[...] = (acc_ref[...] / (cnt_ref[...] + 1e-16)).astype(o_ref.dtype)


# -----------------------------------------------------------------------------
# Tiling: TB multiple of 8 dividing B (or full B), tS multiple of 128 dividing S
# (or full S) so all BlockSpecs satisfy the (8, 128) constraint.  Tiles are
# shrunk until the double-buffered x tile fits ~24 MiB (safe on v7x's 64 MiB
# VMEM, good utilization on v5e/v6e).
# -----------------------------------------------------------------------------
def _pick_tiles(B, S, D, itemsize, x_double_buffer_budget=24 << 20):
    tb = next((c for c in (64, 32, 16, 8) if B % c == 0), B)
    ts = next((c for c in (2048, 1024, 512, 256, 128) if S % c == 0), S)
    while 2 * tb * ts * D * itemsize > x_double_buffer_budget:
        if ts >= 256:
            ts //= 2          # stays a multiple of 128 dividing S
        elif tb >= 16:
            tb //= 2          # stays a multiple of 8 dividing B
        else:
            break
    return tb, ts


def average_pooling(x, mask=None):
    """Pallas equivalent of AveragePooling.forward.

    x:    (B, S, D)
    mask: (B, 1, S) or None
    returns (B, D)
    """
    B, S, D = x.shape
    TB, tS = _pick_tiles(B, S, D, x.dtype.itemsize)
    grid = (B // TB, S // tS)

    out_shape = jax.ShapeDtypeStruct((B, D), x.dtype)
    out_spec = pl.BlockSpec((TB, D), lambda b, k: (b, 0))
    x_spec = pl.BlockSpec((TB, tS, D), lambda b, k: (b, k, 0))
    compiler_params = pltpu.CompilerParams(
        dimension_semantics=("parallel", "arbitrary"),
        vmem_limit_bytes=64 << 20,
    )

    if mask is None:
        cost = pl.CostEstimate(
            flops=B * S * D,
            transcendentals=0,
            bytes_accessed=x.size * x.dtype.itemsize + B * D * x.dtype.itemsize,
        )
        return pl.pallas_call(
            functools.partial(_mean_pool_kernel, inv_seq_len=1.0 / S),
            out_shape=out_shape,
            grid=grid,
            in_specs=[x_spec],
            out_specs=out_spec,
            scratch_shapes=[pltpu.VMEM((TB, D), jnp.float32)],
            compiler_params=compiler_params,
            cost_estimate=cost,
        )(x)

    # (B, 1, S) -> (B, S): free contiguous reshape; gives (TB, tS) mask blocks
    # instead of a 1-sublane (TB, 1, tS) block.
    mask2d = mask.reshape(B, S)
    cost = pl.CostEstimate(
        flops=3 * B * S * D,
        transcendentals=0,
        bytes_accessed=(x.size * x.dtype.itemsize
                        + mask2d.size * mask2d.dtype.itemsize
                        + B * D * x.dtype.itemsize),
    )
    mask_spec = pl.BlockSpec((TB, tS), lambda b, k: (b, k))
    return pl.pallas_call(
        _masked_pool_kernel,
        out_shape=out_shape,
        grid=grid,
        in_specs=[mask_spec, x_spec],
        out_specs=out_spec,
        scratch_shapes=[pltpu.VMEM((TB, D), jnp.float32),
                        pltpu.VMEM((TB, 1), jnp.float32)],
        compiler_params=compiler_params,
        cost_estimate=cost,
    )(mask2d, x)


if __name__ == "__main__":
    key = jax.random.PRNGKey(0)
    kx, km = jax.random.split(key)

    B, S, D = 2, 8, 32
    x = jax.random.normal(kx, (B, S, D), dtype=jnp.float32)
    # Deterministic padding mask: batch 0 has 5 valid tokens, batch 1 has 8.
    lengths = jnp.array([5, 8], dtype=jnp.int32)
    mask = (jnp.arange(S)[None, :] < lengths[:, None]).astype(jnp.float32)
    mask = mask[:, None, :]                                 # (B, 1, S)

    # Path 1: mask == None -> plain mean over the sequence axis.
    out_mean = jax.block_until_ready(average_pooling(x))
    ref_mean = jnp.mean(x, axis=1)
    assert out_mean.shape == (B, D)
    assert jnp.allclose(out_mean, ref_mean, atol=1e-5, rtol=1e-5)

    # Path 2: masked average pooling (sum-pool + normalize by non-padding length).
    out_masked = jax.block_until_ready(average_pooling(x, mask))
    ref_masked = jnp.squeeze(jnp.matmul(mask, x), axis=1) / (
        jnp.sum(mask, axis=-1) + 1e-16)
    assert out_masked.shape == (B, D)
    assert jnp.allclose(out_masked, ref_masked, atol=1e-5, rtol=1e-5)

    print("KERNEL_OK")
</pallas_src>

<mosaic_0001>
module attributes {stable_mosaic.version = 11 : i64} {
  func.func @_mean_pool_kernel(%arg0: i32, %arg1: i32, %arg2: memref<2x8x32xf32, #tpu.memory_space<vmem>>, %arg3: memref<2x32xf32, #tpu.memory_space<vmem>>, %arg4: memref<2x32xf32, #tpu.memory_space<vmem>>) attributes {dimension_semantics = [#tpu.dimension_semantics<parallel>, #tpu.dimension_semantics<arbitrary>], iteration_bounds = array<i64: 1, 1>, scalar_prefetch = 0 : i64, scratch_operands = 1 : i64, tpu.core_type = #tpu.core_type<tc>, window_params = [{transform_indices = @transform_0, window_bounds = array<i64: 2, 8, 32>}, {transform_indices = @transform_1, window_bounds = array<i64: 2, 32>}]} {
    %c0_i32 = arith.constant 0 : i32
    %0 = arith.cmpi eq, %arg1, %c0_i32 : i32
    %1 = arith.extui %0 : i1 to i32
    %c0_i32_0 = arith.constant 0 : i32
    %2 = arith.cmpi ne, %1, %c0_i32_0 : i32
    scf.if %2 {
      %cst_9 = arith.constant 0.000000e+00 : f32
      %11 = vector.broadcast %cst_9 : f32 to vector<2x32xf32>
      %c0_10 = arith.constant 0 : index
      %c0_11 = arith.constant 0 : index
      %12 = vector.load %arg4[%c0_10, %c0_11] : memref<2x32xf32, #tpu.memory_space<vmem>>, vector<2x32xf32>
      tpu.vector_store %arg4[%c0_10, %c0_11], %11 {strides = array<i32>} : memref<2x32xf32, #tpu.memory_space<vmem>>, vector<2x32xf32>,
    } else {
    }
    %c0 = arith.constant 0 : index
    %c0_1 = arith.constant 0 : index
    %c0_2 = arith.constant 0 : index
    %3 = vector.load %arg2[%c0, %c0_1, %c0_2] : memref<2x8x32xf32, #tpu.memory_space<vmem>>, vector<2x8x32xf32>
    %c0_3 = arith.constant 0 : index
    %c0_4 = arith.constant 0 : index
    %4 = vector.load %arg4[%c0_3, %c0_4] : memref<2x32xf32, #tpu.memory_space<vmem>>, vector<2x32xf32>
    %cst = arith.constant dense<0.000000e+00> : vector<2x32xf32>
    %5 = vector.multi_reduction <add>, %3, %cst [1] : vector<2x8x32xf32> to vector<2x32xf32>
    %6 = arith.addf %4, %5 : vector<2x32xf32>
    %c0_5 = arith.constant 0 : index
    %c0_6 = arith.constant 0 : index
    %7 = vector.load %arg4[%c0_5, %c0_6] : memref<2x32xf32, #tpu.memory_space<vmem>>, vector<2x32xf32>
    tpu.vector_store %arg4[%c0_5, %c0_6], %6 {strides = array<i32>} : memref<2x32xf32, #tpu.memory_space<vmem>>, vector<2x32xf32>,
    %c0_i32_7 = arith.constant 0 : i32
    %8 = arith.cmpi eq, %arg1, %c0_i32_7 : i32
    %9 = arith.extui %8 : i1 to i32
    %c0_i32_8 = arith.constant 0 : i32
    %10 = arith.cmpi ne, %9, %c0_i32_8 : i32
    scf.if %10 {
      %c0_9 = arith.constant 0 : index
      %c0_10 = arith.constant 0 : index
      %11 = vector.load %arg4[%c0_9, %c0_10] : memref<2x32xf32, #tpu.memory_space<vmem>>, vector<2x32xf32>
      %cst_11 = arith.constant 1.250000e-01 : f32
      %12 = vector.broadcast %cst_11 : f32 to vector<2x32xf32>
      %13 = arith.mulf %11, %12 : vector<2x32xf32>
      %c0_12 = arith.constant 0 : index
      %c0_13 = arith.constant 0 : index
      %14 = vector.load %arg3[%c0_12, %c0_13] : memref<2x32xf32, #tpu.memory_space<vmem>>, vector<2x32xf32>
      tpu.vector_store %arg3[%c0_12, %c0_13], %13 {strides = array<i32>} : memref<2x32xf32, #tpu.memory_space<vmem>>, vector<2x32xf32>,
    } else {
    }
    return
  }
  func.func @transform_0(%arg0: i32, %arg1: i32) -> (i32, i32, i32) {
    %c0_i32 = arith.constant 0 : i32
    %c0_i32_0 = arith.constant 0 : i32
    return %arg0, %arg1, %c0_i32 : i32, i32, i32
  }
  func.func @transform_1(%arg0: i32, %arg1: i32) -> (i32, i32) {
    %c0_i32 = arith.constant 0 : i32
    %c0_i32_0 = arith.constant 0 : i32
    return %arg0, %c0_i32 : i32, i32
  }
}

</mosaic_0001>

<llo_original>
// kernel: tpu_custom_call.1
$region0: #{tpu_custom_call.1}
  #allocation0 [shape = 'u32[]', space=smem, size = 0x4, offset = 0x4, fixed_abs, tag = 'smem constant byte address 0x4 - core index']
  #allocation1 [shape = 'u32[144,128]{1,0:T(1,128)}', space=vmem, size = 0x12000, scoped, tag = 'internal scratch']
  #allocation2 [shape = 'f32[2,32]{1,0:T(2,128)}', space=vmem, size = 0x400, scoped, tag = 'scratch operand']
  %s0 = inlined_call_operand.hbm [shape: f32[2,8,32], index: 0, kind: input, shape index: {}]
  %s1 = inlined_call_operand.hbm [shape: f32[2,32], index: 1, kind: output, shape index: {}]
  %s2 = sld [smem:[#allocation0]]
  $region26: #{tpu_custom_call.1} parent=0
    _
  %s4 = ssub.s32 1, %s2
  %s5 = scalar_select 0, %s4, %s2
  $region1: #{tpu_custom_call.1} parent=0
    #allocation3 [shape = 'u8[8192]{0}', space=vmem, size = 0x2000, scoped, tag = 'input window, operand 0, single buffered']
    #allocation4 [shape = 's32[1]{0}', space=sflag, size = 0x4, scoped, tag = 'scoped memory for tpu_custom_call.1']
    #allocation5 [shape = 's32[1]{0}', space=sflag, size = 0x4, scoped, tag = 'scoped memory for tpu_custom_call.1']
    #allocation6 [shape = 'u8[1024]{0}', space=vmem, size = 0x400, scoped, tag = 'output window, operand 0, single buffered']
    %6 = vsyncpa [#allocation4], 0
    %7 = vsyncpa [#allocation5], 0
    // Predicated region
    $region2: #{tpu_custom_call.1} parent=1 // pred_check
      _
    $region3: #{tpu_custom_call.1} parent=1 // pred_check_branch
      %9 = sbr.rel (0) target = $region5
    $region4: #{tpu_custom_call.1} parent=1 // pred_region
      %s11 = ssub.s32 256, 256
      %12 = vsyncadd [#allocation4], %s11
      %s13 = sshll.u32 [#allocation3], 4
      %s14 = int_to_ptr.vmem [resolvable:$true] %s13
      %19 = dma.hbm_to_vmem [thread:$0]  %s0, 256, %s14, [#allocation4], 128, 128, 8
    $region5: #{tpu_custom_call.1} parent=1 // pred_fallthru
      _
    // Predicated region
    $region6: #{tpu_custom_call.1} parent=1 // pred_check
      _
    $region7: #{tpu_custom_call.1} parent=1 // pred_check_branch
      %21 = sbr.rel (0) target = $region9
    $region8: #{tpu_custom_call.1} parent=1 // pred_region
      %22 = dma.done [#allocation4], 256
    $region9: #{tpu_custom_call.1} parent=1 // pred_fallthru
      _
    %p23 = scmp.eq.s32.totalorder 0, 0
    // Predicated region
    $region10: #{tpu_custom_call.1} parent=1 // pred_check
      %p24 = pneg %p23
    $region11: #{tpu_custom_call.1} parent=1 // pred_check_branch
      %26 = sbr.rel (%p24) target = $region13
    $region12: #{tpu_custom_call.1} parent=1 // pred_region
      %vm27 = vcmask 254976
      %28 = vst.msk [vmem:[#allocation2] sm:$0x3] %vm27, 0.0
    $region13: #{tpu_custom_call.1} parent=1 // pred_fallthru
      _
    %v29 = vld [vmem:[#allocation3] sm:$0xff]
    %v30 = vld [vmem:[#allocation3 + $0x8] sm:$0xff]
    %v31 = vld [vmem:[#allocation2] sm:$0x3]
    %vm32 = vcmask 261120
    %v33 = vsel %vm32, %v29, 0.0
    %v34 = vrot.slane %v33, 4
    %v35 = vadd.f32 %v33, %v34
    %v36 = vrot.slane %v35, 2
    %v37 = vadd.f32 %v35, %v36
    %v38 = vrot.slane %v37, 1
    %v39 = vadd.f32 %v37, %v38
    %v40 = vsel %vm32, %v30, 0.0
    %v41 = vrot.slane %v40, 4
    %v42 = vadd.f32 %v40, %v41
    %v43 = vrot.slane %v42, 2
    %v44 = vadd.f32 %v42, %v43
    %v45 = vrot.slane %v44, 1
    %v46 = vadd.f32 %v44, %v45
    %vm49 = vcmask 1041409
    %v50 = vsel %vm49, %v46, %v39
    %v52 = vadd.f32 %v31, %v50
    %vm53 = vcmask 254976
    %54 = vst.msk [vmem:[#allocation2] sm:$0x3] %vm53, %v52
    // Predicated region
    $region14: #{tpu_custom_call.1} parent=1 // pred_check
      %p55 = pneg %p23
    $region15: #{tpu_custom_call.1} parent=1 // pred_check_branch
      %57 = sbr.rel (%p55) target = $region17
    $region16: #{tpu_custom_call.1} parent=1 // pred_region
      %v58 = vld [vmem:[#allocation2] sm:$0x3]
      %v59 = vmul.f32 %v58, 0.125
      %60 = vst.msk [vmem:[#allocation6] sm:$0x3] %vm53, %v59
    $region17: #{tpu_custom_call.1} parent=1 // pred_fallthru
      _
    // Predicated region
    $region18: #{tpu_custom_call.1} parent=1 // pred_check
      _
    $region19: #{tpu_custom_call.1} parent=1 // pred_check_branch
      %62 = sbr.rel (0) target = $region21
    $region20: #{tpu_custom_call.1} parent=1 // pred_region
      %s64 = ssub.s32 32, 32
      %65 = vsyncadd [#allocation5], %s64
      %s67 = sshll.u32 [#allocation6], 4
      %s68 = int_to_ptr.vmem [resolvable:$true] %s67
      %70 = dma.vmem_to_hbm [thread:$0]  %s68, 32, %s1, [#allocation5]
    $region21: #{tpu_custom_call.1} parent=1 // pred_fallthru
      _
    // Predicated region
    $region22: #{tpu_custom_call.1} parent=1 // pred_check
      _
    $region23: #{tpu_custom_call.1} parent=1 // pred_check_branch
      %72 = sbr.rel (0) target = $region25
    $region24: #{tpu_custom_call.1} parent=1 // pred_region
      %73 = dma.done [#allocation5], 32
    $region25: #{tpu_custom_call.1} parent=1 // pred_fallthru
      _
    %74 = vsyncpa [#allocation4], 1
    %75 = vsyncpa [#allocation5], 1

</llo_original>
